<compile_context>
chip_gen: v7x
topology: tpu7x:2x2x1
jax: 0.10.0
libtpu: 0.0.40
codegen_flags: <defaults>
</compile_context>

<pallas_src>
import jax
import jax.numpy as jnp
import numpy as np
from jax import lax
from jax.experimental import pallas as pl
from jax.experimental.pallas import tpu as pltpu

EPS = 1e-5  # OpenFold LayerNorm default eps


def _layernorm(v, gamma, beta):
    mean = jnp.mean(v, axis=-1, keepdims=True)
    var = jnp.mean(jnp.square(v - mean), axis=-1, keepdims=True)
    return (v - mean) * lax.rsqrt(var + EPS) * gamma + beta


# ---------------- Kernel 1: m_update = LayerNorm_m(m) ----------------
def m_update_kernel(m_ref, g_ref, b_ref, o_ref):
    o_ref[...] = _layernorm(m_ref[...], g_ref[0, :], b_ref[0, :]).astype(o_ref.dtype)


# ---- Kernel 2: z_update = Linear(distogram_onehot(x)) + LayerNorm_z(z) ----
def z_update_kernel(xi_ref, xj_ref, z_ref, sqb_ref, upb_ref,
                    w_ref, bias_ref, gz_ref, bz_ref, o_ref):
    ti, tj, cz = o_ref.shape
    nb = w_ref.shape[0]

    xi = xi_ref[...]   # (ti, 3) -- rows of this i-tile
    xj = xj_ref[...]   # (tj, 3) -- rows of this j-tile

    # Pairwise squared distance, coordinate-by-coordinate (matches the
    # reference's direct (xi - xj)^2 numerics; the (ti, tj) map is tiny).
    d = jnp.zeros((ti, tj), jnp.float32)
    for k in range(3):
        dk = xi[:, k:k + 1] - xj[:, k][None, :]   # (ti, tj)
        d = d + dk * dk

    sqb = sqb_ref[0, :]   # (nb,)
    upb = upb_ref[0, :]   # (nb,)
    # One-hot distogram bin membership: (d > squared_bins) & (d < upper).
    onehot = ((d[:, :, None] > sqb) & (d[:, :, None] < upb)).astype(jnp.float32)  # (ti, tj, nb)

    # Linear(no_bins -> c_z) on the one-hot encoding (small-K MXU matmul).
    # Reshapes only collapse/split the leading dims (tj % 8 == 0) -> layout preserving.
    proj = jnp.dot(onehot.reshape(ti * tj, nb), w_ref[...],
                   preferred_element_type=jnp.float32)
    proj = proj.reshape(ti, tj, cz) + bias_ref[0, :]

    zn = _layernorm(z_ref[...], gz_ref[0, :], bz_ref[0, :])
    o_ref[...] = (proj + zn).astype(o_ref.dtype)


# ---------------- Tile selection ----------------
def _pick_z_tiles(n_res, c_z):
    """Pick (ti, tj) so the z-kernel's resident VMEM stays around ~24 MiB."""
    tj = n_res if n_res <= 128 else 128            # multiple of 128 or full -> lane/sublane friendly
    # Rough fp32 bytes of resident VMEM per (i, j) pair:
    #   double-buffered z-in + out blocks (4*c_z), lane-padded one-hot (128),
    #   in-kernel temporaries (~3*c_z).
    per_pair = (4 * c_z + 128 + 3 * c_z) * 4
    budget = 24 * 1024 * 1024
    ti = min(n_res, 512, max(8, budget // (tj * per_pair)))
    if ti < n_res:
        ti = max(8, (ti // 8) * 8)
    return ti, tj


# ---------------- Wrapper ----------------
def recycling_embedder(m, z, x, seqs, params, *, min_bin, max_bin, no_bins, inf,
                       tile_m=None, tile_i=None, tile_j=None):
    del seqs  # track_seq_states=False
    n_res, c_m = m.shape
    c_z = z.shape[-1]

    bins = jnp.linspace(min_bin, max_bin, no_bins, dtype=x.dtype)
    squared_bins = bins ** 2
    upper = jnp.concatenate([squared_bins[1:], jnp.array([inf], dtype=x.dtype)])

    # ----- m_update: mem-bound LayerNorm, one big row tile -----
    tm = tile_m if tile_m is not None else min(n_res, 1024)
    tm = min(tm, n_res)
    if tm < n_res:
        tm = max(8, (tm // 8) * 8)
    m_update = pl.pallas_call(
        m_update_kernel,
        out_shape=jax.ShapeDtypeStruct((n_res, c_m), m.dtype),
        grid=(pl.cdiv(n_res, tm),),
        in_specs=[
            pl.BlockSpec((tm, c_m), lambda i: (i, 0)),
            pl.BlockSpec((1, c_m), lambda i: (0, 0)),
            pl.BlockSpec((1, c_m), lambda i: (0, 0)),
        ],
        out_specs=pl.BlockSpec((tm, c_m), lambda i: (i, 0)),
        compiler_params=pltpu.CompilerParams(
            dimension_semantics=("parallel",),
            vmem_limit_bytes=32 * 1024 * 1024),
    )(m, params["ln_m_g"].reshape(1, c_m), params["ln_m_b"].reshape(1, c_m))

    # ----- z_update: 2-D residue tiling, both axes parallel -----
    ti_d, tj_d = _pick_z_tiles(n_res, c_z)
    ti = tile_i if tile_i is not None else ti_d
    tj = tile_j if tile_j is not None else tj_d
    ti = min(ti, n_res)
    tj = min(tj, n_res)
    if ti < n_res:
        ti = max(8, (ti // 8) * 8)
    if tj < n_res:
        tj = max(8, (tj // 8) * 8)

    z_update = pl.pallas_call(
        z_update_kernel,
        out_shape=jax.ShapeDtypeStruct((n_res, n_res, c_z), z.dtype),
        grid=(pl.cdiv(n_res, ti), pl.cdiv(n_res, tj)),
        in_specs=[
            pl.BlockSpec((ti, 3), lambda i, j: (i, 0)),          # x rows (i-tile)
            pl.BlockSpec((tj, 3), lambda i, j: (j, 0)),          # x rows (j-tile)
            pl.BlockSpec((ti, tj, c_z), lambda i, j: (i, j, 0)),  # z tile
            pl.BlockSpec((1, no_bins), lambda i, j: (0, 0)),
            pl.BlockSpec((1, no_bins), lambda i, j: (0, 0)),
            pl.BlockSpec((no_bins, c_z), lambda i, j: (0, 0)),
            pl.BlockSpec((1, c_z), lambda i, j: (0, 0)),
            pl.BlockSpec((1, c_z), lambda i, j: (0, 0)),
            pl.BlockSpec((1, c_z), lambda i, j: (0, 0)),
        ],
        out_specs=pl.BlockSpec((ti, tj, c_z), lambda i, j: (i, j, 0)),
        compiler_params=pltpu.CompilerParams(
            dimension_semantics=("parallel", "parallel"),
            vmem_limit_bytes=32 * 1024 * 1024),
    )(x, x, z,
      squared_bins.reshape(1, no_bins), upper.reshape(1, no_bins),
      params["linear_w"], params["linear_b"].reshape(1, c_z),
      params["ln_z_g"].reshape(1, c_z), params["ln_z_b"].reshape(1, c_z))

    return m_update, z_update


# ---------------- Pure-JAX reference (mirrors the PyTorch forward) ----------------
def reference(m, z, x, params, *, min_bin, max_bin, no_bins, inf):
    bins = jnp.linspace(min_bin, max_bin, no_bins, dtype=x.dtype)
    sq = bins ** 2
    upper = jnp.concatenate([sq[1:], jnp.array([inf], x.dtype)])

    def ln(v, g, b):
        mu = jnp.mean(v, -1, keepdims=True)
        var = jnp.mean((v - mu) ** 2, -1, keepdims=True)
        return (v - mu) / jnp.sqrt(var + EPS) * g + b

    m_up = ln(m, params["ln_m_g"], params["ln_m_b"])
    d = jnp.sum((x[..., None, :] - x[..., None, :, :]) ** 2, axis=-1, keepdims=True)
    d = ((d > sq) * (d < upper)).astype(x.dtype)
    d = d @ params["linear_w"] + params["linear_b"]
    z_up = d + ln(z, params["ln_z_g"], params["ln_z_b"])
    return m_up, z_up


if __name__ == "__main__":
    # Small shapes consistent with the module
    N_RES, C_M, C_Z, NO_BINS = 16, 32, 16, 8
    MIN_BIN, MAX_BIN, INF = 3.25, 20.75, 1e8

    key = jax.random.PRNGKey(0)
    k_m, k_z, k_x, k_w, k_b, k1, k2, k3, k4 = jax.random.split(key, 9)

    m = jax.random.normal(k_m, (N_RES, C_M), jnp.float32)
    z = jax.random.normal(k_z, (N_RES, N_RES, C_Z), jnp.float32)
    x = jax.random.normal(k_x, (N_RES, 3), jnp.float32) * 10.0  # Angstrom-ish coords
    seqs = jnp.zeros((N_RES, 21), jnp.float32)  # unused (track_seq_states=False)

    params = {
        "linear_w": jax.random.normal(k_w, (NO_BINS, C_Z), jnp.float32) * 0.1,
        "linear_b": jax.random.normal(k_b, (C_Z,), jnp.float32) * 0.1,
        "ln_m_g": 1.0 + 0.1 * jax.random.normal(k1, (C_M,), jnp.float32),
        "ln_m_b": 0.1 * jax.random.normal(k2, (C_M,), jnp.float32),
        "ln_z_g": 1.0 + 0.1 * jax.random.normal(k3, (C_Z,), jnp.float32),
        "ln_z_b": 0.1 * jax.random.normal(k4, (C_Z,), jnp.float32),
    }

    m_ref, z_ref = reference(
        m, z, x, params,
        min_bin=MIN_BIN, max_bin=MAX_BIN, no_bins=NO_BINS, inf=INF)

    # 1) Default (large-tile, single-block at this toy size) configuration.
    m_up, z_up = recycling_embedder(
        m, z, x, seqs, params,
        min_bin=MIN_BIN, max_bin=MAX_BIN, no_bins=NO_BINS, inf=INF)
    jax.block_until_ready((m_up, z_up))
    np.testing.assert_allclose(np.asarray(m_up), np.asarray(m_ref), rtol=1e-5, atol=1e-5)
    np.testing.assert_allclose(np.asarray(z_up), np.asarray(z_ref), rtol=1e-5, atol=1e-5)

    # 2) Forced small tiles to exercise the multi-block 2-D grid / index maps.
    m_up2, z_up2 = recycling_embedder(
        m, z, x, seqs, params,
        min_bin=MIN_BIN, max_bin=MAX_BIN, no_bins=NO_BINS, inf=INF,
        tile_m=8, tile_i=8, tile_j=8)
    jax.block_until_ready((m_up2, z_up2))
    np.testing.assert_allclose(np.asarray(m_up2), np.asarray(m_ref), rtol=1e-5, atol=1e-5)
    np.testing.assert_allclose(np.asarray(z_up2), np.asarray(z_ref), rtol=1e-5, atol=1e-5)

    print("KERNEL_OK")
</pallas_src>

<mosaic_0001>
module attributes {stable_mosaic.version = 11 : i64} {
  func.func @m_update_kernel(%arg0: i32, %arg1: memref<16x32xf32, #tpu.memory_space<vmem>>, %arg2: memref<1x32xf32, #tpu.memory_space<vmem>>, %arg3: memref<1x32xf32, #tpu.memory_space<vmem>>, %arg4: memref<16x32xf32, #tpu.memory_space<vmem>>) attributes {dimension_semantics = [#tpu.dimension_semantics<parallel>], iteration_bounds = array<i64: 1>, scalar_prefetch = 0 : i64, scratch_operands = 0 : i64, tpu.core_type = #tpu.core_type<tc>, window_params = [{transform_indices = @transform_0, window_bounds = array<i64: 16, 32>}, {pipeline_mode = #tpu.pipeline_mode<synchronous>, transform_indices = @transform_1, window_bounds = array<i64: 1, 32>}, {pipeline_mode = #tpu.pipeline_mode<synchronous>, transform_indices = @transform_2, window_bounds = array<i64: 1, 32>}, {transform_indices = @transform_3, window_bounds = array<i64: 16, 32>}]} {
    %c0 = arith.constant 0 : index
    %c0_0 = arith.constant 0 : index
    %0 = vector.load %arg1[%c0, %c0_0] : memref<16x32xf32, #tpu.memory_space<vmem>>, vector<16x32xf32>
    %c0_1 = arith.constant 0 : index
    %c0_2 = arith.constant 0 : index
    %1 = vector.load %arg2[%c0_1, %c0_2] : memref<1x32xf32, #tpu.memory_space<vmem>>, vector<1x32xf32>
    %2 = vector.shape_cast %1 : vector<1x32xf32> to vector<32xf32>
    %c0_3 = arith.constant 0 : index
    %c0_4 = arith.constant 0 : index
    %3 = vector.load %arg3[%c0_3, %c0_4] : memref<1x32xf32, #tpu.memory_space<vmem>>, vector<1x32xf32>
    %4 = vector.shape_cast %3 : vector<1x32xf32> to vector<32xf32>
    %cst = arith.constant dense<0.000000e+00> : vector<16xf32>
    %5 = vector.multi_reduction <add>, %0, %cst [1] : vector<16x32xf32> to vector<16xf32>
    %6 = vector.shape_cast %5 : vector<16xf32> to vector<16x1xf32>
    %cst_5 = arith.constant 3.200000e+01 : f32
    %7 = vector.broadcast %cst_5 : f32 to vector<16x1xf32>
    %8 = arith.divf %6, %7 : vector<16x1xf32>
    %9 = vector.broadcast %8 : vector<16x1xf32> to vector<16x32xf32>
    %10 = arith.subf %0, %9 : vector<16x32xf32>
    %11 = arith.mulf %10, %10 : vector<16x32xf32>
    %cst_6 = arith.constant dense<0.000000e+00> : vector<16xf32>
    %12 = vector.multi_reduction <add>, %11, %cst_6 [1] : vector<16x32xf32> to vector<16xf32>
    %13 = vector.shape_cast %12 : vector<16xf32> to vector<16x1xf32>
    %cst_7 = arith.constant 3.200000e+01 : f32
    %14 = vector.broadcast %cst_7 : f32 to vector<16x1xf32>
    %15 = arith.divf %13, %14 : vector<16x1xf32>
    %16 = vector.broadcast %8 : vector<16x1xf32> to vector<16x32xf32>
    %17 = arith.subf %0, %16 : vector<16x32xf32>
    %cst_8 = arith.constant 9.99999974E-6 : f32
    %18 = vector.broadcast %cst_8 : f32 to vector<16x1xf32>
    %19 = arith.addf %15, %18 : vector<16x1xf32>
    %20 = math.rsqrt %19 : vector<16x1xf32>
    %21 = vector.broadcast %20 : vector<16x1xf32> to vector<16x32xf32>
    %22 = arith.mulf %17, %21 : vector<16x32xf32>
    %23 = vector.shape_cast %2 : vector<32xf32> to vector<1x32xf32>
    %24 = vector.broadcast %23 : vector<1x32xf32> to vector<16x32xf32>
    %25 = arith.mulf %22, %24 : vector<16x32xf32>
    %26 = vector.shape_cast %4 : vector<32xf32> to vector<1x32xf32>
    %27 = vector.broadcast %26 : vector<1x32xf32> to vector<16x32xf32>
    %28 = arith.addf %25, %27 : vector<16x32xf32>
    %c0_9 = arith.constant 0 : index
    %c0_10 = arith.constant 0 : index
    %29 = vector.load %arg4[%c0_9, %c0_10] : memref<16x32xf32, #tpu.memory_space<vmem>>, vector<16x32xf32>
    tpu.vector_store %arg4[%c0_9, %c0_10], %28 {strides = array<i32>} : memref<16x32xf32, #tpu.memory_space<vmem>>, vector<16x32xf32>,
    return
  }
  func.func @transform_0(%arg0: i32) -> (i32, i32) {
    %c0_i32 = arith.constant 0 : i32
    %c0_i32_0 = arith.constant 0 : i32
    return %arg0, %c0_i32 : i32, i32
  }
  func.func @transform_1(%arg0: i32) -> (i32, i32) {
    %c0_i32 = arith.constant 0 : i32
    %c0_i32_0 = arith.constant 0 : i32
    %c0_i32_1 = arith.constant 0 : i32
    return %c0_i32, %c0_i32_0 : i32, i32
  }
  func.func @transform_2(%arg0: i32) -> (i32, i32) {
    %c0_i32 = arith.constant 0 : i32
    %c0_i32_0 = arith.constant 0 : i32
    %c0_i32_1 = arith.constant 0 : i32
    return %c0_i32, %c0_i32_0 : i32, i32
  }
  func.func @transform_3(%arg0: i32) -> (i32, i32) {
    %c0_i32 = arith.constant 0 : i32
    %c0_i32_0 = arith.constant 0 : i32
    return %arg0, %c0_i32 : i32, i32
  }
}

</mosaic_0001>

<llo_original>
// kernel: tpu_custom_call.1
$region0: #{tpu_custom_call.1}
  #allocation0 [shape = 'u32[]', space=smem, size = 0x4, offset = 0x4, fixed_abs, tag = 'smem constant byte address 0x4 - core index']
  #allocation1 [shape = 'u32[144,128]{1,0:T(1,128)}', space=vmem, size = 0x12000, scoped, tag = 'internal scratch']
  %s0 = inlined_call_operand.hbm [shape: f32[16,32], index: 0, kind: input, shape index: {}]
  %s1 = inlined_call_operand.vmem [shape: f32[1,32], index: 1, kind: input, shape index: {}]
  %s2 = inlined_call_operand.vmem [shape: f32[1,32], index: 2, kind: input, shape index: {}]
  %s3 = inlined_call_operand.hbm [shape: f32[16,32], index: 3, kind: output, shape index: {}]
  %s4 = sld [smem:[#allocation0]]
  $region26: #{tpu_custom_call.1} parent=0
    _
  %s6 = ssub.s32 1, %s4
  %s7 = scalar_select 0, %s6, %s4
  $region1: #{tpu_custom_call.1} parent=0
    #allocation2 [shape = 'u8[8192]{0}', space=vmem, size = 0x2000, scoped, tag = 'input window, operand 0, single buffered']
    #allocation3 [shape = 's32[1]{0}', space=sflag, size = 0x4, scoped, tag = 'scoped memory for tpu_custom_call.1']
    #allocation4 [shape = 's32[1]{0}', space=sflag, size = 0x4, scoped, tag = 'scoped memory for tpu_custom_call.1']
    #allocation5 [shape = 'u8[8192]{0}', space=vmem, size = 0x2000, scoped, tag = 'output window, operand 0, single buffered']
    %8 = vsyncpa [#allocation3], 0
    %9 = vsyncpa [#allocation4], 0
    // Predicated region
    $region2: #{tpu_custom_call.1} parent=1 // pred_check
      _
    $region3: #{tpu_custom_call.1} parent=1 // pred_check_branch
      %11 = sbr.rel (0) target = $region5
    $region4: #{tpu_custom_call.1} parent=1 // pred_region
      %s13 = ssub.s32 256, 256
      %14 = vsyncadd [#allocation3], %s13
      %s15 = sshll.u32 [#allocation2], 4
      %s16 = int_to_ptr.vmem [resolvable:$true] %s15
      %21 = dma.hbm_to_vmem [thread:$0]  %s0, 256, %s16, [#allocation3], 128, 128, 8
    $region5: #{tpu_custom_call.1} parent=1 // pred_fallthru
      _
    // Predicated region
    $region6: #{tpu_custom_call.1} parent=1 // pred_check
      _
    $region7: #{tpu_custom_call.1} parent=1 // pred_check_branch
      %23 = sbr.rel (0) target = $region9
    $region8: #{tpu_custom_call.1} parent=1 // pred_region
      _
    $region9: #{tpu_custom_call.1} parent=1 // pred_fallthru
      _
    // Predicated region
    $region10: #{tpu_custom_call.1} parent=1 // pred_check
      _
    $region11: #{tpu_custom_call.1} parent=1 // pred_check_branch
      %25 = sbr.rel (0) target = $region13
    $region12: #{tpu_custom_call.1} parent=1 // pred_region
      _
    $region13: #{tpu_custom_call.1} parent=1 // pred_fallthru
      _
    // Predicated region
    $region14: #{tpu_custom_call.1} parent=1 // pred_check
      _
    $region15: #{tpu_custom_call.1} parent=1 // pred_check_branch
      %27 = sbr.rel (0) target = $region17
    $region16: #{tpu_custom_call.1} parent=1 // pred_region
      %28 = dma.done [#allocation3], 256
    $region17: #{tpu_custom_call.1} parent=1 // pred_fallthru
      _
    %v29 = vld [vmem:[#allocation2] sm:$0xff]
    %v30 = vld [vmem:[#allocation2 + $0x8] sm:$0xff]
    %v31 = vld [vmem:[%s1] sm:$0x1]
    %v32 = vld [vmem:[%s2] sm:$0x1]
    %vm33 = vcmask 261120
    %v34 = vsel %vm33, %v29, 0.0
    %35 = vadd.xlane.f32.xlu0 %v34
    %v36 = vpop.xlane.xlu0 %35
    %v37 = vsel %vm33, %v30, 0.0
    %38 = vadd.xlane.f32.xlu0 %v37
    %v39 = vpop.xlane.xlu0 %38
    %v40 = vrcp.pop 32.0
    %v41 = vmul.f32 %v36, %v40
    %v42 = vmul.f32 %v39, %v40
    %v43 = vsub.f32 %v29, %v41
    %v44 = vsub.f32 %v30, %v42
    %v45 = vmul.f32 %v43, %v43
    %v46 = vmul.f32 %v44, %v44
    %v47 = vsel %vm33, %v45, 0.0
    %48 = vadd.xlane.f32.xlu0 %v47
    %v49 = vpop.xlane.xlu0 %48
    %v50 = vsel %vm33, %v46, 0.0
    %51 = vadd.xlane.f32.xlu0 %v50
    %v52 = vpop.xlane.xlu0 %51
    %v53 = vmul.f32 %v49, %v40
    %v54 = vmul.f32 %v52, %v40
    %v55 = vadd.f32 %v53, 1e-05
    %v56 = vadd.f32 %v54, 1e-05
    %v57 = vrsqrt.pop %v55
    %v58 = vrsqrt.pop %v56
    %v59 = vmul.f32 %v43, %v57
    %v60 = vmul.f32 %v44, %v58
    %v62 = vlaneseq
    %v63 = vshrl.u32 %v62, 7
    %v64 = vsub.s32 0, %v63
    %v65 = vrot.slane %v31, %v64
    %v67 = vmul.f32 %v59, %v65
    %v68 = vmul.f32 %v60, %v65
    %v70 = vlaneseq
    %v71 = vshrl.u32 %v70, 7
    %v72 = vsub.s32 0, %v71
    %v73 = vrot.slane %v32, %v72
    %v75 = vadd.f32 %v67, %v73
    %v76 = vadd.f32 %v68, %v73
    %77 = vst.msk [vmem:[#allocation5] sm:$0xff] %vm33, %v75
    %78 = vst.msk [vmem:[#allocation5 + $0x8] sm:$0xff] %vm33, %v76
    // Predicated region
    $region18: #{tpu_custom_call.1} parent=1 // pred_check
      _
    $region19: #{tpu_custom_call.1} parent=1 // pred_check_branch
      %80 = sbr.rel (0) target = $region21
    $region20: #{tpu_custom_call.1} parent=1 // pred_region
      %s82 = ssub.s32 256, 256
      %83 = vsyncadd [#allocation4], %s82
      %s84 = sshll.u32 [#allocation5], 4
      %s85 = int_to_ptr.vmem [resolvable:$true] %s84
      %90 = dma.vmem_to_hbm [thread:$0]  %s85, 256, %s3, [#allocation4], 128, 128, 8
    $region21: #{tpu_custom_call.1} parent=1 // pred_fallthru
      _
    // Predicated region
    $region22: #{tpu_custom_call.1} parent=1 // pred_check
      _
    $region23: #{tpu_custom_call.1} parent=1 // pred_check_branch
      %92 = sbr.rel (0) target = $region25
    $region24: #{tpu_custom_call.1} parent=1 // pred_region
      %93 = dma.done [#allocation4], 256
    $region25: #{tpu_custom_call.1} parent=1 // pred_fallthru
      _
    %94 = vsyncpa [#allocation3], 1
    %95 = vsyncpa [#allocation4], 1

</llo_original>
